<compile_context>
chip_gen: v5e
topology: v5e:2x2
jax: 0.10.0
libtpu: 0.0.40
codegen_flags: <defaults>
</compile_context>

<pallas_src>
import functools

import jax
import jax.numpy as jnp
from jax import lax
from jax.experimental import pallas as pl
from jax.experimental.pallas import tpu as pltpu

LN_EPS = 1e-5  # nn.LayerNorm default
_HIGHEST = lax.Precision.HIGHEST


def _expand_ln_kernel(xT_ref, wT_ref, params_ref, o_ref):
    # xT_ref:     (C_in, TN)   streamed tile of x^T (voxels on lanes -> lane-dense)
    # wT_ref:     (KC, C_in)   resident; rows ordered (kd, kh, kw, co)
    # params_ref: (C_out, 3)   columns: [bias, gamma, beta]
    # o_ref:      (KC, TN)     lane-dense output tile (out^T)
    x = xT_ref[...]
    w = wT_ref[...]

    c_out = params_ref.shape[0]
    kc, tn = o_ref.shape
    k3 = kc // c_out
    inv_c = jnp.float32(1.0 / c_out)

    # ConvTranspose for all K3 kernel offsets at once: (KC, C_in) @ (C_in, TN).
    # f32 MXU accumulation at HIGHEST precision for parity with the f32 reference.
    y = jnp.dot(w, x, preferred_element_type=jnp.float32, precision=_HIGHEST)

    # Hoisted lane-broadcasts of the tiny per-channel vectors (reused by all K3 groups).
    bias = jnp.broadcast_to(params_ref[:, 0:1], (c_out, tn))
    gamma = jnp.broadcast_to(params_ref[:, 1:2], (c_out, tn))
    beta = jnp.broadcast_to(params_ref[:, 2:3], (c_out, tn))

    # Per-output-voxel LayerNorm over C_out: exact f32 sublane reductions per kernel-offset
    # group.  Static unroll over K3 (tiny); slices are sublane-tile aligned (C_out == 8).
    for g in range(k3):
        r0 = g * c_out
        yg = y[r0:r0 + c_out, :] + bias                   # (C_out, TN)
        mu = jnp.sum(yg, axis=0, keepdims=True) * inv_c   # (1, TN)
        cg = yg - mu
        var = jnp.sum(cg * cg, axis=0, keepdims=True) * inv_c
        yn = cg * lax.rsqrt(var + LN_EPS)
        o_ref[r0:r0 + c_out, :] = (yn * gamma + beta).astype(o_ref.dtype)


def _round_up(v, m):
    return ((v + m - 1) // m) * m


@functools.partial(jax.jit, static_argnames=("up",))
def patch_expanding_3d(x, weight, bias, gamma, beta, *, up):
    """x: (B, C_in, D, H, W); weight: (C_in, C_out, k, k, k) (ConvTranspose3d layout)."""
    B, C_in, D, H, W = x.shape
    C_out = weight.shape[1]
    k = up
    K3 = k * k * k
    KC = K3 * C_out
    N = B * D * H * W

    # --- glue (input): channel-to-front shuffle only (spatial W stays the contiguous minor
    #     dim) -> cheap major-dim relayout producing the lane-dense x^T.
    xT = jnp.transpose(x, (1, 0, 2, 3, 4)).reshape(C_in, N)

    # Weight (C_in, C_out, k, k, k) -> (KC, C_in), rows ordered (kd, kh, kw, co).
    wT = jnp.transpose(weight, (2, 3, 4, 1, 0)).reshape(KC, C_in)

    # Tiny resident operand: columns [bias, gamma, beta] per output channel.
    params = jnp.stack([bias, gamma, beta], axis=1).astype(jnp.float32)  # (C_out, 3)

    # --- tile size: lane-dense column tiles, sized from a per-generation VMEM budget.
    try:
        vmem_bytes = int(pltpu.get_tpu_info().vmem_capacity_bytes)
    except Exception:
        vmem_bytes = 64 * 1024 * 1024  # conservative default = v7x per-TC VMEM

    # Per-column VMEM: 2x(C_in,TN) in + 2x(KC,TN) out (double-buffered) + (KC,TN) f32
    # intermediate + loop temps ~= 1.0 KiB/col; use 1.25 KiB for headroom.
    per_col = 1280
    budget = min(int(vmem_bytes * 0.65), 80 * 1024 * 1024)
    tn_cap = max(128, budget // per_col)
    tn_cap = min(tn_cap, 32768 if vmem_bytes >= 96 * 1024 * 1024 else 16384)

    if N <= 256:
        TN = N  # single full-extent tile; too small to split lane-dense
    else:
        half = _round_up(-(-N // 2), 128)      # >= 2 grid steps so both v7x TCs get work
        TN = min(tn_cap, half)
        TN = max(128, (TN // 128) * 128)       # lane-dense multiple of 128; Pallas clips tail
    grid = (pl.cdiv(N, TN),)

    y = pl.pallas_call(
        _expand_ln_kernel,
        out_shape=jax.ShapeDtypeStruct((KC, N), x.dtype),
        grid_spec=pltpu.PrefetchScalarGridSpec(
            num_scalar_prefetch=0,
            grid=grid,
            in_specs=[
                pl.BlockSpec((C_in, TN), lambda i: (0, i)),   # x^T streamed once, lane-dense
                pl.BlockSpec((KC, C_in), lambda i: (0, 0)),   # resident weights
                pl.BlockSpec((C_out, 3), lambda i: (0, 0)),   # resident bias/gamma/beta
            ],
            out_specs=pl.BlockSpec((KC, TN), lambda i: (0, i)),
        ),
        compiler_params=pltpu.CompilerParams(
            dimension_semantics=("parallel",),
            vmem_limit_bytes=int(min(vmem_bytes * 0.85, 100 * 1024 * 1024)),
        ),
    )(xT, wT, params)

    # --- glue (output): free reshape of (KC, N) -> (kd, kh, kw, co, B, D, H, W), then ONE
    #     permute back to NCDHW.
    # TODO(synk): if the downstream consumer accepts this kernel-offset/channel-major layout,
    # drop this permute entirely -- it is the single largest HBM mover left.
    y = y.reshape(k, k, k, C_out, B, D, H, W)
    y = jnp.transpose(y, (4, 3, 5, 0, 6, 1, 7, 2))  # (B, C_out, D, kd, H, kh, W, kw)
    return y.reshape(B, C_out, D * k, H * k, W * k)


def _reference(x, weight, bias, gamma, beta, up):
    """Pure-JAX reference: ConvTranspose3d (k == stride, pad 0) + channel-first LayerNorm."""
    B, C_in, D, H, W = x.shape
    C_out = weight.shape[1]
    k = up
    y = jnp.einsum('bcdhw,coijk->bodihjwk', x, weight, precision=_HIGHEST)
    y = y.reshape(B, C_out, D * k, H * k, W * k) + bias[None, :, None, None, None]
    mean = jnp.mean(y, axis=1, keepdims=True)
    var = jnp.mean(jnp.square(y - mean), axis=1, keepdims=True)
    y = (y - mean) * lax.rsqrt(var + LN_EPS)
    y = y * gamma[None, :, None, None, None] + beta[None, :, None, None, None]
    return y


if __name__ == "__main__":
    # Small deterministic setup: in_dim=16, out_dim=8, up_scaling_factor=2.
    B, C_in, C_out, D, H, W, up = 2, 16, 8, 4, 4, 4, 2
    key = jax.random.PRNGKey(0)
    kx, kw, kb, kg, kbeta = jax.random.split(key, 5)

    x = jax.random.normal(kx, (B, C_in, D, H, W), dtype=jnp.float32)
    # ConvTranspose3d weight layout: (in_channels, out_channels, kD, kH, kW)
    weight = 0.1 * jax.random.normal(kw, (C_in, C_out, up, up, up), dtype=jnp.float32)
    bias = 0.1 * jax.random.normal(kb, (C_out,), dtype=jnp.float32)
    gamma = 1.0 + 0.1 * jax.random.normal(kg, (C_out,), dtype=jnp.float32)
    beta = 0.1 * jax.random.normal(kbeta, (C_out,), dtype=jnp.float32)

    out = patch_expanding_3d(x, weight, bias, gamma, beta, up=up)
    out = jax.block_until_ready(out)

    ref = _reference(x, weight, bias, gamma, beta, up)
    assert out.shape == (B, C_out, D * up, H * up, W * up), out.shape
    max_err = float(jnp.max(jnp.abs(out - ref)))
    assert jnp.allclose(out, ref, atol=1e-3, rtol=1e-3), max_err

    print("KERNEL_OK")
</pallas_src>

<mosaic_0001>
module attributes {stable_mosaic.version = 11 : i64} {
  func.func @_expand_ln_kernel(%arg0: i32, %arg1: memref<16x128xf32, #tpu.memory_space<vmem>>, %arg2: memref<64x16xf32, #tpu.memory_space<vmem>>, %arg3: memref<8x3xf32, #tpu.memory_space<vmem>>, %arg4: memref<64x128xf32, #tpu.memory_space<vmem>>) attributes {dimension_semantics = [#tpu.dimension_semantics<parallel>], iteration_bounds = array<i64: 1>, scalar_prefetch = 0 : i64, scratch_operands = 0 : i64, tpu.core_type = #tpu.core_type<tc>, window_params = [{transform_indices = @transform_0, window_bounds = array<i64: 16, 128>}, {pipeline_mode = #tpu.pipeline_mode<synchronous>, transform_indices = @transform_1, window_bounds = array<i64: 64, 16>}, {pipeline_mode = #tpu.pipeline_mode<synchronous>, transform_indices = @transform_2, window_bounds = array<i64: 8, 3>}, {transform_indices = @transform_3, window_bounds = array<i64: 64, 128>}]} {
    %c0 = arith.constant 0 : index
    %c0_0 = arith.constant 0 : index
    %0 = vector.load %arg1[%c0, %c0_0] : memref<16x128xf32, #tpu.memory_space<vmem>>, vector<16x128xf32>
    %c0_1 = arith.constant 0 : index
    %c0_2 = arith.constant 0 : index
    %1 = vector.load %arg2[%c0_1, %c0_2] : memref<64x16xf32, #tpu.memory_space<vmem>>, vector<64x16xf32>
    %cst = arith.constant dense<0.000000e+00> : vector<64x128xf32>
    %2 = tpu.matmul %1, %0, %cst {dimension_numbers = #tpu.dot_dimension_numbers<[1], [0], [0], [1], [0, 0, 1, 1], [], []>, precision = #tpu.contract_precision<fp32>} : vector<64x16xf32>, vector<16x128xf32>, vector<64x128xf32> -> vector<64x128xf32>
    %c0_3 = arith.constant 0 : index
    %c0_4 = arith.constant 0 : index
    %3 = vector.load %arg3[%c0_3, %c0_4] : memref<8x3xf32, #tpu.memory_space<vmem>>, vector<8x1xf32>
    %4 = vector.shape_cast %3 : vector<8x1xf32> to vector<8x1xf32>
    %5 = vector.broadcast %4 : vector<8x1xf32> to vector<8x128xf32>
    %c0_5 = arith.constant 0 : index
    %c1 = arith.constant 1 : index
    %6 = vector.load %arg3[%c0_5, %c1] : memref<8x3xf32, #tpu.memory_space<vmem>>, vector<8x1xf32>
    %7 = vector.shape_cast %6 : vector<8x1xf32> to vector<8x1xf32>
    %8 = vector.broadcast %7 : vector<8x1xf32> to vector<8x128xf32>
    %c0_6 = arith.constant 0 : index
    %c2 = arith.constant 2 : index
    %9 = vector.load %arg3[%c0_6, %c2] : memref<8x3xf32, #tpu.memory_space<vmem>>, vector<8x1xf32>
    %10 = vector.shape_cast %9 : vector<8x1xf32> to vector<8x1xf32>
    %11 = vector.broadcast %10 : vector<8x1xf32> to vector<8x128xf32>
    %12 = vector.extract_strided_slice %2 {offsets = [0, 0], sizes = [8, 128], strides = [1, 1]} : vector<64x128xf32> to vector<8x128xf32>
    %13 = arith.addf %12, %5 : vector<8x128xf32>
    %cst_7 = arith.constant dense<0.000000e+00> : vector<128xf32>
    %14 = vector.multi_reduction <add>, %13, %cst_7 [0] : vector<8x128xf32> to vector<128xf32>
    %15 = vector.shape_cast %14 : vector<128xf32> to vector<1x128xf32>
    %cst_8 = arith.constant 1.250000e-01 : f32
    %16 = vector.broadcast %cst_8 : f32 to vector<1x128xf32>
    %17 = arith.mulf %15, %16 : vector<1x128xf32>
    %18 = vector.broadcast %17 : vector<1x128xf32> to vector<8x128xf32>
    %19 = arith.subf %13, %18 : vector<8x128xf32>
    %20 = arith.mulf %19, %19 : vector<8x128xf32>
    %cst_9 = arith.constant dense<0.000000e+00> : vector<128xf32>
    %21 = vector.multi_reduction <add>, %20, %cst_9 [0] : vector<8x128xf32> to vector<128xf32>
    %22 = vector.shape_cast %21 : vector<128xf32> to vector<1x128xf32>
    %cst_10 = arith.constant 1.250000e-01 : f32
    %23 = vector.broadcast %cst_10 : f32 to vector<1x128xf32>
    %24 = arith.mulf %22, %23 : vector<1x128xf32>
    %cst_11 = arith.constant 9.99999974E-6 : f32
    %25 = vector.broadcast %cst_11 : f32 to vector<1x128xf32>
    %26 = arith.addf %24, %25 : vector<1x128xf32>
    %27 = math.rsqrt %26 : vector<1x128xf32>
    %28 = vector.broadcast %27 : vector<1x128xf32> to vector<8x128xf32>
    %29 = arith.mulf %19, %28 : vector<8x128xf32>
    %30 = arith.mulf %29, %8 : vector<8x128xf32>
    %31 = arith.addf %30, %11 : vector<8x128xf32>
    %c0_12 = arith.constant 0 : index
    %c0_13 = arith.constant 0 : index
    %32 = vector.load %arg4[%c0_12, %c0_13] : memref<64x128xf32, #tpu.memory_space<vmem>>, vector<8x128xf32>
    tpu.vector_store %arg4[%c0_12, %c0_13], %31 {strides = array<i32>} : memref<64x128xf32, #tpu.memory_space<vmem>>, vector<8x128xf32>,
    %33 = vector.extract_strided_slice %2 {offsets = [8, 0], sizes = [8, 128], strides = [1, 1]} : vector<64x128xf32> to vector<8x128xf32>
    %34 = arith.addf %33, %5 : vector<8x128xf32>
    %cst_14 = arith.constant dense<0.000000e+00> : vector<128xf32>
    %35 = vector.multi_reduction <add>, %34, %cst_14 [0] : vector<8x128xf32> to vector<128xf32>
    %36 = vector.shape_cast %35 : vector<128xf32> to vector<1x128xf32>
    %cst_15 = arith.constant 1.250000e-01 : f32
    %37 = vector.broadcast %cst_15 : f32 to vector<1x128xf32>
    %38 = arith.mulf %36, %37 : vector<1x128xf32>
    %39 = vector.broadcast %38 : vector<1x128xf32> to vector<8x128xf32>
    %40 = arith.subf %34, %39 : vector<8x128xf32>
    %41 = arith.mulf %40, %40 : vector<8x128xf32>
    %cst_16 = arith.constant dense<0.000000e+00> : vector<128xf32>
    %42 = vector.multi_reduction <add>, %41, %cst_16 [0] : vector<8x128xf32> to vector<128xf32>
    %43 = vector.shape_cast %42 : vector<128xf32> to vector<1x128xf32>
    %cst_17 = arith.constant 1.250000e-01 : f32
    %44 = vector.broadcast %cst_17 : f32 to vector<1x128xf32>
    %45 = arith.mulf %43, %44 : vector<1x128xf32>
    %cst_18 = arith.constant 9.99999974E-6 : f32
    %46 = vector.broadcast %cst_18 : f32 to vector<1x128xf32>
    %47 = arith.addf %45, %46 : vector<1x128xf32>
    %48 = math.rsqrt %47 : vector<1x128xf32>
    %49 = vector.broadcast %48 : vector<1x128xf32> to vector<8x128xf32>
    %50 = arith.mulf %40, %49 : vector<8x128xf32>
    %51 = arith.mulf %50, %8 : vector<8x128xf32>
    %52 = arith.addf %51, %11 : vector<8x128xf32>
    %c8 = arith.constant 8 : index
    %c0_19 = arith.constant 0 : index
    %53 = vector.load %arg4[%c8, %c0_19] : memref<64x128xf32, #tpu.memory_space<vmem>>, vector<8x128xf32>
    tpu.vector_store %arg4[%c8, %c0_19], %52 {strides = array<i32>} : memref<64x128xf32, #tpu.memory_space<vmem>>, vector<8x128xf32>,
    %54 = vector.extract_strided_slice %2 {offsets = [16, 0], sizes = [8, 128], strides = [1, 1]} : vector<64x128xf32> to vector<8x128xf32>
    %55 = arith.addf %54, %5 : vector<8x128xf32>
    %cst_20 = arith.constant dense<0.000000e+00> : vector<128xf32>
    %56 = vector.multi_reduction <add>, %55, %cst_20 [0] : vector<8x128xf32> to vector<128xf32>
    %57 = vector.shape_cast %56 : vector<128xf32> to vector<1x128xf32>
    %cst_21 = arith.constant 1.250000e-01 : f32
    %58 = vector.broadcast %cst_21 : f32 to vector<1x128xf32>
    %59 = arith.mulf %57, %58 : vector<1x128xf32>
    %60 = vector.broadcast %59 : vector<1x128xf32> to vector<8x128xf32>
    %61 = arith.subf %55, %60 : vector<8x128xf32>
    %62 = arith.mulf %61, %61 : vector<8x128xf32>
    %cst_22 = arith.constant dense<0.000000e+00> : vector<128xf32>
    %63 = vector.multi_reduction <add>, %62, %cst_22 [0] : vector<8x128xf32> to vector<128xf32>
    %64 = vector.shape_cast %63 : vector<128xf32> to vector<1x128xf32>
    %cst_23 = arith.constant 1.250000e-01 : f32
    %65 = vector.broadcast %cst_23 : f32 to vector<1x128xf32>
    %66 = arith.mulf %64, %65 : vector<1x128xf32>
    %cst_24 = arith.constant 9.99999974E-6 : f32
    %67 = vector.broadcast %cst_24 : f32 to vector<1x128xf32>
    %68 = arith.addf %66, %67 : vector<1x128xf32>
    %69 = math.rsqrt %68 : vector<1x128xf32>
    %70 = vector.broadcast %69 : vector<1x128xf32> to vector<8x128xf32>
    %71 = arith.mulf %61, %70 : vector<8x128xf32>
    %72 = arith.mulf %71, %8 : vector<8x128xf32>
    %73 = arith.addf %72, %11 : vector<8x128xf32>
    %c16 = arith.constant 16 : index
    %c0_25 = arith.constant 0 : index
    %74 = vector.load %arg4[%c16, %c0_25] : memref<64x128xf32, #tpu.memory_space<vmem>>, vector<8x128xf32>
    tpu.vector_store %arg4[%c16, %c0_25], %73 {strides = array<i32>} : memref<64x128xf32, #tpu.memory_space<vmem>>, vector<8x128xf32>,
    %75 = vector.extract_strided_slice %2 {offsets = [24, 0], sizes = [8, 128], strides = [1, 1]} : vector<64x128xf32> to vector<8x128xf32>
    %76 = arith.addf %75, %5 : vector<8x128xf32>
    %cst_26 = arith.constant dense<0.000000e+00> : vector<128xf32>
    %77 = vector.multi_reduction <add>, %76, %cst_26 [0] : vector<8x128xf32> to vector<128xf32>
    %78 = vector.shape_cast %77 : vector<128xf32> to vector<1x128xf32>
    %cst_27 = arith.constant 1.250000e-01 : f32
    %79 = vector.broadcast %cst_27 : f32 to vector<1x128xf32>
    %80 = arith.mulf %78, %79 : vector<1x128xf32>
    %81 = vector.broadcast %80 : vector<1x128xf32> to vector<8x128xf32>
    %82 = arith.subf %76, %81 : vector<8x128xf32>
    %83 = arith.mulf %82, %82 : vector<8x128xf32>
    %cst_28 = arith.constant dense<0.000000e+00> : vector<128xf32>
    %84 = vector.multi_reduction <add>, %83, %cst_28 [0] : vector<8x128xf32> to vector<128xf32>
    %85 = vector.shape_cast %84 : vector<128xf32> to vector<1x128xf32>
    %cst_29 = arith.constant 1.250000e-01 : f32
    %86 = vector.broadcast %cst_29 : f32 to vector<1x128xf32>
    %87 = arith.mulf %85, %86 : vector<1x128xf32>
    %cst_30 = arith.constant 9.99999974E-6 : f32
    %88 = vector.broadcast %cst_30 : f32 to vector<1x128xf32>
    %89 = arith.addf %87, %88 : vector<1x128xf32>
    %90 = math.rsqrt %89 : vector<1x128xf32>
    %91 = vector.broadcast %90 : vector<1x128xf32> to vector<8x128xf32>
    %92 = arith.mulf %82, %91 : vector<8x128xf32>
    %93 = arith.mulf %92, %8 : vector<8x128xf32>
    %94 = arith.addf %93, %11 : vector<8x128xf32>
    %c24 = arith.constant 24 : index
    %c0_31 = arith.constant 0 : index
    %95 = vector.load %arg4[%c24, %c0_31] : memref<64x128xf32, #tpu.memory_space<vmem>>, vector<8x128xf32>
    tpu.vector_store %arg4[%c24, %c0_31], %94 {strides = array<i32>} : memref<64x128xf32, #tpu.memory_space<vmem>>, vector<8x128xf32>,
    %96 = vector.extract_strided_slice %2 {offsets = [32, 0], sizes = [8, 128], strides = [1, 1]} : vector<64x128xf32> to vector<8x128xf32>
    %97 = arith.addf %96, %5 : vector<8x128xf32>
    %cst_32 = arith.constant dense<0.000000e+00> : vector<128xf32>
    %98 = vector.multi_reduction <add>, %97, %cst_32 [0] : vector<8x128xf32> to vector<128xf32>
    %99 = vector.shape_cast %98 : vector<128xf32> to vector<1x128xf32>
    %cst_33 = arith.constant 1.250000e-01 : f32
    %100 = vector.broadcast %cst_33 : f32 to vector<1x128xf32>
    %101 = arith.mulf %99, %100 : vector<1x128xf32>
    %102 = vector.broadcast %101 : vector<1x128xf32> to vector<8x128xf32>
    %103 = arith.subf %97, %102 : vector<8x128xf32>
    %104 = arith.mulf %103, %103 : vector<8x128xf32>
    %cst_34 = arith.constant dense<0.000000e+00> : vector<128xf32>
    %105 = vector.multi_reduction <add>, %104, %cst_34 [0] : vector<8x128xf32> to vector<128xf32>
    %106 = vector.shape_cast %105 : vector<128xf32> to vector<1x128xf32>
    %cst_35 = arith.constant 1.250000e-01 : f32
    %107 = vector.broadcast %cst_35 : f32 to vector<1x128xf32>
    %108 = arith.mulf %106, %107 : vector<1x128xf32>
    %cst_36 = arith.constant 9.99999974E-6 : f32
    %109 = vector.broadcast %cst_36 : f32 to vector<1x128xf32>
    %110 = arith.addf %108, %109 : vector<1x128xf32>
    %111 = math.rsqrt %110 : vector<1x128xf32>
    %112 = vector.broadcast %111 : vector<1x128xf32> to vector<8x128xf32>
    %113 = arith.mulf %103, %112 : vector<8x128xf32>
    %114 = arith.mulf %113, %8 : vector<8x128xf32>
    %115 = arith.addf %114, %11 : vector<8x128xf32>
    %c32 = arith.constant 32 : index
    %c0_37 = arith.constant 0 : index
    %116 = vector.load %arg4[%c32, %c0_37] : memref<64x128xf32, #tpu.memory_space<vmem>>, vector<8x128xf32>
    tpu.vector_store %arg4[%c32, %c0_37], %115 {strides = array<i32>} : memref<64x128xf32, #tpu.memory_space<vmem>>, vector<8x128xf32>,
    %117 = vector.extract_strided_slice %2 {offsets = [40, 0], sizes = [8, 128], strides = [1, 1]} : vector<64x128xf32> to vector<8x128xf32>
    %118 = arith.addf %117, %5 : vector<8x128xf32>
    %cst_38 = arith.constant dense<0.000000e+00> : vector<128xf32>
    %119 = vector.multi_reduction <add>, %118, %cst_38 [0] : vector<8x128xf32> to vector<128xf32>
    %120 = vector.shape_cast %119 : vector<128xf32> to vector<1x128xf32>
    %cst_39 = arith.constant 1.250000e-01 : f32
    %121 = vector.broadcast %cst_39 : f32 to vector<1x128xf32>
    %122 = arith.mulf %120, %121 : vector<1x128xf32>
    %123 = vector.broadcast %122 : vector<1x128xf32> to vector<8x128xf32>
    %124 = arith.subf %118, %123 : vector<8x128xf32>
    %125 = arith.mulf %124, %124 : vector<8x128xf32>
    %cst_40 = arith.constant dense<0.000000e+00> : vector<128xf32>
    %126 = vector.multi_reduction <add>, %125, %cst_40 [0] : vector<8x128xf32> to vector<128xf32>
    %127 = vector.shape_cast %126 : vector<128xf32> to vector<1x128xf32>
    %cst_41 = arith.constant 1.250000e-01 : f32
    %128 = vector.broadcast %cst_41 : f32 to vector<1x128xf32>
    %129 = arith.mulf %127, %128 : vector<1x128xf32>
    %cst_42 = arith.constant 9.99999974E-6 : f32
    %130 = vector.broadcast %cst_42 : f32 to vector<1x128xf32>
    %131 = arith.addf %129, %130 : vector<1x128xf32>
    %132 = math.rsqrt %131 : vector<1x128xf32>
    %133 = vector.broadcast %132 : vector<1x128xf32> to vector<8x128xf32>
    %134 = arith.mulf %124, %133 : vector<8x128xf32>
    %135 = arith.mulf %134, %8 : vector<8x128xf32>
    %136 = arith.addf %135, %11 : vector<8x128xf32>
    %c40 = arith.constant 40 : index
    %c0_43 = arith.constant 0 : index
    %137 = vector.load %arg4[%c40, %c0_43] : memref<64x128xf32, #tpu.memory_space<vmem>>, vector<8x128xf32>
    tpu.vector_store %arg4[%c40, %c0_43], %136 {strides = array<i32>} : memref<64x128xf32, #tpu.memory_space<vmem>>, vector<8x128xf32>,
    %138 = vector.extract_strided_slice %2 {offsets = [48, 0], sizes = [8, 128], strides = [1, 1]} : vector<64x128xf32> to vector<8x128xf32>
    %139 = arith.addf %138, %5 : vector<8x128xf32>
    %cst_44 = arith.constant dense<0.000000e+00> : vector<128xf32>
    %140 = vector.multi_reduction <add>, %139, %cst_44 [0] : vector<8x128xf32> to vector<128xf32>
    %141 = vector.shape_cast %140 : vector<128xf32> to vector<1x128xf32>
    %cst_45 = arith.constant 1.250000e-01 : f32
    %142 = vector.broadcast %cst_45 : f32 to vector<1x128xf32>
    %143 = arith.mulf %141, %142 : vector<1x128xf32>
    %144 = vector.broadcast %143 : vector<1x128xf32> to vector<8x128xf32>
    %145 = arith.subf %139, %144 : vector<8x128xf32>
    %146 = arith.mulf %145, %145 : vector<8x128xf32>
    %cst_46 = arith.constant dense<0.000000e+00> : vector<128xf32>
    %147 = vector.multi_reduction <add>, %146, %cst_46 [0] : vector<8x128xf32> to vector<128xf32>
    %148 = vector.shape_cast %147 : vector<128xf32> to vector<1x128xf32>
    %cst_47 = arith.constant 1.250000e-01 : f32
    %149 = vector.broadcast %cst_47 : f32 to vector<1x128xf32>
    %150 = arith.mulf %148, %149 : vector<1x128xf32>
    %cst_48 = arith.constant 9.99999974E-6 : f32
    %151 = vector.broadcast %cst_48 : f32 to vector<1x128xf32>
    %152 = arith.addf %150, %151 : vector<1x128xf32>
    %153 = math.rsqrt %152 : vector<1x128xf32>
    %154 = vector.broadcast %153 : vector<1x128xf32> to vector<8x128xf32>
    %155 = arith.mulf %145, %154 : vector<8x128xf32>
    %156 = arith.mulf %155, %8 : vector<8x128xf32>
    %157 = arith.addf %156, %11 : vector<8x128xf32>
    %c48 = arith.constant 48 : index
    %c0_49 = arith.constant 0 : index
    %158 = vector.load %arg4[%c48, %c0_49] : memref<64x128xf32, #tpu.memory_space<vmem>>, vector<8x128xf32>
    tpu.vector_store %arg4[%c48, %c0_49], %157 {strides = array<i32>} : memref<64x128xf32, #tpu.memory_space<vmem>>, vector<8x128xf32>,
    %159 = vector.extract_strided_slice %2 {offsets = [56, 0], sizes = [8, 128], strides = [1, 1]} : vector<64x128xf32> to vector<8x128xf32>
    %160 = arith.addf %159, %5 : vector<8x128xf32>
    %cst_50 = arith.constant dense<0.000000e+00> : vector<128xf32>
    %161 = vector.multi_reduction <add>, %160, %cst_50 [0] : vector<8x128xf32> to vector<128xf32>
    %162 = vector.shape_cast %161 : vector<128xf32> to vector<1x128xf32>
    %cst_51 = arith.constant 1.250000e-01 : f32
    %163 = vector.broadcast %cst_51 : f32 to vector<1x128xf32>
    %164 = arith.mulf %162, %163 : vector<1x128xf32>
    %165 = vector.broadcast %164 : vector<1x128xf32> to vector<8x128xf32>
    %166 = arith.subf %160, %165 : vector<8x128xf32>
    %167 = arith.mulf %166, %166 : vector<8x128xf32>
    %cst_52 = arith.constant dense<0.000000e+00> : vector<128xf32>
    %168 = vector.multi_reduction <add>, %167, %cst_52 [0] : vector<8x128xf32> to vector<128xf32>
    %169 = vector.shape_cast %168 : vector<128xf32> to vector<1x128xf32>
    %cst_53 = arith.constant 1.250000e-01 : f32
    %170 = vector.broadcast %cst_53 : f32 to vector<1x128xf32>
    %171 = arith.mulf %169, %170 : vector<1x128xf32>
    %cst_54 = arith.constant 9.99999974E-6 : f32
    %172 = vector.broadcast %cst_54 : f32 to vector<1x128xf32>
    %173 = arith.addf %171, %172 : vector<1x128xf32>
    %174 = math.rsqrt %173 : vector<1x128xf32>
    %175 = vector.broadcast %174 : vector<1x128xf32> to vector<8x128xf32>
    %176 = arith.mulf %166, %175 : vector<8x128xf32>
    %177 = arith.mulf %176, %8 : vector<8x128xf32>
    %178 = arith.addf %177, %11 : vector<8x128xf32>
    %c56 = arith.constant 56 : index
    %c0_55 = arith.constant 0 : index
    %179 = vector.load %arg4[%c56, %c0_55] : memref<64x128xf32, #tpu.memory_space<vmem>>, vector<8x128xf32>
    tpu.vector_store %arg4[%c56, %c0_55], %178 {strides = array<i32>} : memref<64x128xf32, #tpu.memory_space<vmem>>, vector<8x128xf32>,
    return
  }
  func.func @transform_0(%arg0: i32) -> (i32, i32) {
    %c0_i32 = arith.constant 0 : i32
    %c0_i32_0 = arith.constant 0 : i32
    return %c0_i32, %arg0 : i32, i32
  }
  func.func @transform_1(%arg0: i32) -> (i32, i32) {
    %c0_i32 = arith.constant 0 : i32
    %c0_i32_0 = arith.constant 0 : i32
    %c0_i32_1 = arith.constant 0 : i32
    return %c0_i32, %c0_i32_0 : i32, i32
  }
  func.func @transform_2(%arg0: i32) -> (i32, i32) {
    %c0_i32 = arith.constant 0 : i32
    %c0_i32_0 = arith.constant 0 : i32
    %c0_i32_1 = arith.constant 0 : i32
    return %c0_i32, %c0_i32_0 : i32, i32
  }
  func.func @transform_3(%arg0: i32) -> (i32, i32) {
    %c0_i32 = arith.constant 0 : i32
    %c0_i32_0 = arith.constant 0 : i32
    return %c0_i32, %arg0 : i32, i32
  }
}

</mosaic_0001>

<llo_original>
// kernel: patch_expanding_3d.1
$region0: #{patch_expanding_3d.1}
  #allocation0 [shape = 'u32[]', space=smem, size = 0x4, offset = 0x4, fixed_abs, tag = 'smem constant byte address 0x4 - core index']
  #allocation1 [shape = 'u32[72,128]{1,0:T(1,128)}', space=vmem, size = 0x9000, scoped, tag = 'internal scratch']
  %s0 = inlined_call_operand.vmem [shape: f32[16,128], index: 0, kind: input, shape index: {}]
  %s1 = inlined_call_operand.vmem [shape: f32[64,16], index: 1, kind: input, shape index: {}]
  %s2 = inlined_call_operand.vmem [shape: f32[8,3], index: 2, kind: input, shape index: {}]
  %s3 = inlined_call_operand.vmem [shape: f32[64,128], index: 3, kind: output, shape index: {}]
  %s4 = sld [smem:[#allocation0]]
  $region22: #{patch_expanding_3d.1} parent=0
    _
  %s6 = ssub.s32 1, %s4
  %s7 = scalar_select 0, %s6, %s4
  // Predicated region
  $region2: #{patch_expanding_3d.1} parent=0 // pred_check
    _
  $region3: #{patch_expanding_3d.1} parent=0 // pred_check_branch
    %9 = sbr.rel (0) target = $region5
  $region4: #{patch_expanding_3d.1} parent=0 // pred_region
    _
  $region5: #{patch_expanding_3d.1} parent=0 // pred_fallthru
    _
  // Predicated region
  $region6: #{patch_expanding_3d.1} parent=0 // pred_check
    _
  $region7: #{patch_expanding_3d.1} parent=0 // pred_check_branch
    %11 = sbr.rel (0) target = $region9
  $region8: #{patch_expanding_3d.1} parent=0 // pred_region
    _
  $region9: #{patch_expanding_3d.1} parent=0 // pred_fallthru
    _
  // Predicated region
  $region10: #{patch_expanding_3d.1} parent=0 // pred_check
    _
  $region11: #{patch_expanding_3d.1} parent=0 // pred_check_branch
    %13 = sbr.rel (0) target = $region13
  $region12: #{patch_expanding_3d.1} parent=0 // pred_region
    _
  $region13: #{patch_expanding_3d.1} parent=0 // pred_fallthru
    _
  %v14 = vld [vmem:[%s0] sm:$0xff]
  %v15 = vld [vmem:[%s0 + $0x8] sm:$0xff]
  %v16 = vld [vmem:[%s1] sm:$0xff]
  %v17 = vld [vmem:[%s1 + $0x8] sm:$0xff]
  %v18 = vld [vmem:[%s1 + $0x10] sm:$0xff]
  %v19 = vld [vmem:[%s1 + $0x18] sm:$0xff]
  %v20 = vld [vmem:[%s1 + $0x20] sm:$0xff]
  %v21 = vld [vmem:[%s1 + $0x28] sm:$0xff]
  %v22 = vld [vmem:[%s1 + $0x30] sm:$0xff]
  %v23 = vld [vmem:[%s1 + $0x38] sm:$0xff]
  %vm24 = vcmask 130048
  %v26 = vsel %vm24, %v16, 0
  %v29 = vsel %vm24, %v17, 0
  %v32 = vsel %vm24, %v18, 0
  %v35 = vsel %vm24, %v19, 0
  %v38 = vsel %vm24, %v20, 0
  %v41 = vsel %vm24, %v21, 0
  %v44 = vsel %vm24, %v22, 0
  %v47 = vsel %vm24, %v23, 0
  %49 = vmatpush.msra.mxu0 0.0
  %50 = vmatpush.msra.mxu0 0.0
  %51 = vmatpush.msra.mxu0 0.0
  %52 = vmatpush.msra.mxu0 0.0
  %53 = vmatpush.msra.mxu0 0.0
  %54 = vmatpush.msra.mxu0 0.0
  %55 = vmatpush.msra.mxu0 0.0
  %56 = vmatpush.msra.mxu0 0.0
  %57 = vmatpush.msra.mxu0 0.0
  %58 = vmatpush.msra.mxu0 0.0
  %59 = vmatpush.msra.mxu0 0.0
  %60 = vmatpush.msra.mxu0 0.0
  %61 = vmatpush.msra.mxu0 0.0
  %62 = vmatpush.msra.mxu0 0.0
  %v63 = vand.u32 %v15, 4294901760
  %64 = vmatpush.msra.mxu0 %v63
  %v65 = vand.u32 %v14, 4294901760
  %66 = vmatpush.msra.mxu0 %v65
  %v67 = vand.u32 %v26, 4294901760
  %v68 = vsub.f32 %v26, %v67
  %v69 = vand.u32 %v68, 4294901760
  %v70 = vsub.f32 %v68, %v69
  %v71 = vand.u32 %v70, 4294901760
  %72 = vmatmul.f32.gmra.mxu0 %v71
  %v73 = vpop.f32.mrf.mxu0
  %v74 = vadd.f32 0.0, %v73
  %v75 = vand.u32 %v29, 4294901760
  %v76 = vsub.f32 %v29, %v75
  %v77 = vand.u32 %v76, 4294901760
  %v78 = vsub.f32 %v76, %v77
  %v79 = vand.u32 %v78, 4294901760
  %80 = vmatmul.f32.gmra.mxu0 %v79
  %v81 = vpop.f32.mrf.mxu0
  %v82 = vadd.f32 0.0, %v81
  %v83 = vand.u32 %v32, 4294901760
  %v84 = vsub.f32 %v32, %v83
  %v85 = vand.u32 %v84, 4294901760
  %v86 = vsub.f32 %v84, %v85
  %v87 = vand.u32 %v86, 4294901760
  %88 = vmatmul.f32.gmra.mxu0 %v87
  %v89 = vpop.f32.mrf.mxu0
  %v90 = vadd.f32 0.0, %v89
  %v91 = vand.u32 %v35, 4294901760
  %v92 = vsub.f32 %v35, %v91
  %v93 = vand.u32 %v92, 4294901760
  %v94 = vsub.f32 %v92, %v93
  %v95 = vand.u32 %v94, 4294901760
  %96 = vmatmul.f32.gmra.mxu0 %v95
  %v97 = vpop.f32.mrf.mxu0
  %v98 = vadd.f32 0.0, %v97
  %v99 = vand.u32 %v38, 4294901760
  %v100 = vsub.f32 %v38, %v99
  %v101 = vand.u32 %v100, 4294901760
  %v102 = vsub.f32 %v100, %v101
  %v103 = vand.u32 %v102, 4294901760
  %104 = vmatmul.f32.gmra.mxu0 %v103
  %v105 = vpop.f32.mrf.mxu0
  %v106 = vadd.f32 0.0, %v105
  %v107 = vand.u32 %v41, 4294901760
  %v108 = vsub.f32 %v41, %v107
  %v109 = vand.u32 %v108, 4294901760
  %v110 = vsub.f32 %v108, %v109
  %v111 = vand.u32 %v110, 4294901760
  %112 = vmatmul.f32.gmra.mxu0 %v111
  %v113 = vpop.f32.mrf.mxu0
  %v114 = vadd.f32 0.0, %v113
  %v115 = vand.u32 %v44, 4294901760
  %v116 = vsub.f32 %v44, %v115
  %v117 = vand.u32 %v116, 4294901760
  %v118 = vsub.f32 %v116, %v117
  %v119 = vand.u32 %v118, 4294901760
  %120 = vmatmul.f32.gmra.mxu0 %v119
  %v121 = vpop.f32.mrf.mxu0
  %v122 = vadd.f32 0.0, %v121
  %v123 = vand.u32 %v47, 4294901760
  %v124 = vsub.f32 %v47, %v123
  %v125 = vand.u32 %v124, 4294901760
  %v126 = vsub.f32 %v124, %v125
  %v127 = vand.u32 %v126, 4294901760
  %128 = vmatmul.f32.gmra.mxu0 %v127
  %v129 = vpop.f32.mrf.mxu0
  %v130 = vadd.f32 0.0, %v129
  %131 = vdwg.mxu0
  %132 = vmatpush.msra.mxu0 0.0
  %133 = vmatpush.msra.mxu0 0.0
  %134 = vmatpush.msra.mxu0 0.0
  %135 = vmatpush.msra.mxu0 0.0
  %136 = vmatpush.msra.mxu0 0.0
  %137 = vmatpush.msra.mxu0 0.0
  %138 = vmatpush.msra.mxu0 0.0
  %139 = vmatpush.msra.mxu0 0.0
  %140 = vmatpush.msra.mxu0 0.0
  %141 = vmatpush.msra.mxu0 0.0
  %142 = vmatpush.msra.mxu0 0.0
  %143 = vmatpush.msra.mxu0 0.0
  %144 = vmatpush.msra.mxu0 0.0
  %145 = vmatpush.msra.mxu0 0.0
  %v146 = vand.u32 %v15, 4294901760
  %v147 = vsub.f32 %v15, %v146
  %v148 = vand.u32 %v147, 4294901760
  %v149 = vsub.f32 %v147, %v148
  %v150 = vand.u32 %v149, 4294901760
  %151 = vmatpush.msra.mxu0 %v150
  %v152 = vand.u32 %v14, 4294901760
  %v153 = vsub.f32 %v14, %v152
  %v154 = vand.u32 %v153, 4294901760
  %v155 = vsub.f32 %v153, %v154
  %v156 = vand.u32 %v155, 4294901760
  %157 = vmatpush.msra.mxu0 %v156
  %v158 = vand.u32 %v26, 4294901760
  %159 = vmatmul.f32.gmra.mxu0 %v158
  %v160 = vpop.f32.mrf.mxu0
  %v161 = vadd.f32 %v74, %v160
  %v162 = vand.u32 %v29, 4294901760
  %163 = vmatmul.f32.gmra.mxu0 %v162
  %v164 = vpop.f32.mrf.mxu0
  %v165 = vadd.f32 %v82, %v164
  %v166 = vand.u32 %v32, 4294901760
  %167 = vmatmul.f32.gmra.mxu0 %v166
  %v168 = vpop.f32.mrf.mxu0
  %v169 = vadd.f32 %v90, %v168
  %v170 = vand.u32 %v35, 4294901760
  %171 = vmatmul.f32.gmra.mxu0 %v170
  %v172 = vpop.f32.mrf.mxu0
  %v173 = vadd.f32 %v98, %v172
  %v174 = vand.u32 %v38, 4294901760
  %175 = vmatmul.f32.gmra.mxu0 %v174
  %v176 = vpop.f32.mrf.mxu0
  %v177 = vadd.f32 %v106, %v176
  %v178 = vand.u32 %v41, 4294901760
  %179 = vmatmul.f32.gmra.mxu0 %v178
  %v180 = vpop.f32.mrf.mxu0
  %v181 = vadd.f32 %v114, %v180
  %v182 = vand.u32 %v44, 4294901760
  %183 = vmatmul.f32.gmra.mxu0 %v182
  %v184 = vpop.f32.mrf.mxu0
  %v185 = vadd.f32 %v122, %v184
  %v186 = vand.u32 %v47, 4294901760
  %187 = vmatmul.f32.gmra.mxu0 %v186
  %v188 = vpop.f32.mrf.mxu0
  %v189 = vadd.f32 %v130, %v188
  %190 = vdwg.mxu0
  %191 = vmatpush.msra.mxu0 0.0
  %192 = vmatpush.msra.mxu0 0.0
  %193 = vmatpush.msra.mxu0 0.0
  %194 = vmatpush.msra.mxu0 0.0
  %195 = vmatpush.msra.mxu0 0.0
  %196 = vmatpush.msra.mxu0 0.0
  %197 = vmatpush.msra.mxu0 0.0
  %198 = vmatpush.msra.mxu0 0.0
  %199 = vmatpush.msra.mxu0 0.0
  %200 = vmatpush.msra.mxu0 0.0
  %201 = vmatpush.msra.mxu0 0.0
  %202 = vmatpush.msra.mxu0 0.0
  %203 = vmatpush.msra.mxu0 0.0
  %204 = vmatpush.msra.mxu0 0.0
  %v205 = vand.u32 %v15, 4294901760
  %v206 = vsub.f32 %v15, %v205
  %207 = vmatpush.msra.mxu0 %v206
  %v208 = vand.u32 %v14, 4294901760
  %v209 = vsub.f32 %v14, %v208
  %210 = vmatpush.msra.mxu0 %v209
  %v211 = vand.u32 %v26, 4294901760
  %v212 = vsub.f32 %v26, %v211
  %213 = vmatmul.f32.gmra.mxu0 %v212
  %v214 = vpop.f32.mrf.mxu0
  %v215 = vadd.f32 %v161, %v214
  %v216 = vand.u32 %v29, 4294901760
  %v217 = vsub.f32 %v29, %v216
  %218 = vmatmul.f32.gmra.mxu0 %v217
  %v219 = vpop.f32.mrf.mxu0
  %v220 = vadd.f32 %v165, %v219
  %v221 = vand.u32 %v32, 4294901760
  %v222 = vsub.f32 %v32, %v221
  %223 = vmatmul.f32.gmra.mxu0 %v222
  %v224 = vpop.f32.mrf.mxu0
  %v225 = vadd.f32 %v169, %v224
  %v226 = vand.u32 %v35, 4294901760
  %v227 = vsub.f32 %v35, %v226
  %228 = vmatmul.f32.gmra.mxu0 %v227
  %v229 = vpop.f32.mrf.mxu0
  %v230 = vadd.f32 %v173, %v229
  %v231 = vand.u32 %v38, 4294901760
  %v232 = vsub.f32 %v38, %v231
  %233 = vmatmul.f32.gmra.mxu0 %v232
  %v234 = vpop.f32.mrf.mxu0
  %v235 = vadd.f32 %v177, %v234
  %v236 = vand.u32 %v41, 4294901760
  %v237 = vsub.f32 %v41, %v236
  %238 = vmatmul.f32.gmra.mxu0 %v237
  %v239 = vpop.f32.mrf.mxu0
  %v240 = vadd.f32 %v181, %v239
  %v241 = vand.u32 %v44, 4294901760
  %v242 = vsub.f32 %v44, %v241
  %243 = vmatmul.f32.gmra.mxu0 %v242
  %v244 = vpop.f32.mrf.mxu0
  %v245 = vadd.f32 %v185, %v244
  %v246 = vand.u32 %v47, 4294901760
  %v247 = vsub.f32 %v47, %v246
  %248 = vmatmul.f32.gmra.mxu0 %v247
  %v249 = vpop.f32.mrf.mxu0
  %v250 = vadd.f32 %v189, %v249
  %251 = vdwg.mxu0
  %252 = vmatpush.msra.mxu0 0.0
  %253 = vmatpush.msra.mxu0 0.0
  %254 = vmatpush.msra.mxu0 0.0
  %255 = vmatpush.msra.mxu0 0.0
  %256 = vmatpush.msra.mxu0 0.0
  %257 = vmatpush.msra.mxu0 0.0
  %258 = vmatpush.msra.mxu0 0.0
  %259 = vmatpush.msra.mxu0 0.0
  %260 = vmatpush.msra.mxu0 0.0
  %261 = vmatpush.msra.mxu0 0.0
  %262 = vmatpush.msra.mxu0 0.0
  %263 = vmatpush.msra.mxu0 0.0
  %264 = vmatpush.msra.mxu0 0.0
  %265 = vmatpush.msra.mxu0 0.0
  %v266 = vand.u32 %v15, 4294901760
  %267 = vmatpush.msra.mxu0 %v266
  %v268 = vand.u32 %v14, 4294901760
  %269 = vmatpush.msra.mxu0 %v268
  %v270 = vand.u32 %v26, 4294901760
  %v271 = vsub.f32 %v26, %v270
  %v272 = vand.u32 %v271, 4294901760
  %273 = vmatmul.f32.gmra.mxu0 %v272
  %v274 = vpop.f32.mrf.mxu0
  %v275 = vadd.f32 %v215, %v274
  %v276 = vand.u32 %v29, 4294901760
  %v277 = vsub.f32 %v29, %v276
  %v278 = vand.u32 %v277, 4294901760
  %279 = vmatmul.f32.gmra.mxu0 %v278
  %v280 = vpop.f32.mrf.mxu0
  %v281 = vadd.f32 %v220, %v280
  %v282 = vand.u32 %v32, 4294901760
  %v283 = vsub.f32 %v32, %v282
  %v284 = vand.u32 %v283, 4294901760
  %285 = vmatmul.f32.gmra.mxu0 %v284
  %v286 = vpop.f32.mrf.mxu0
  %v287 = vadd.f32 %v225, %v286
  %v288 = vand.u32 %v35, 4294901760
  %v289 = vsub.f32 %v35, %v288
  %v290 = vand.u32 %v289, 4294901760
  %291 = vmatmul.f32.gmra.mxu0 %v290
  %v292 = vpop.f32.mrf.mxu0
  %v293 = vadd.f32 %v230, %v292
  %v294 = vand.u32 %v38, 4294901760
  %v295 = vsub.f32 %v38, %v294
  %v296 = vand.u32 %v295, 4294901760
  %297 = vmatmul.f32.gmra.mxu0 %v296
  %v298 = vpop.f32.mrf.mxu0
  %v299 = vadd.f32 %v235, %v298
  %v300 = vand.u32 %v41, 4294901760
  %v301 = vsub.f32 %v41, %v300
  %v302 = vand.u32 %v301, 4294901760
  %303 = vmatmul.f32.gmra.mxu0 %v302
  %v304 = vpop.f32.mrf.mxu0
  %v305 = vadd.f32 %v240, %v304
  %v306 = vand.u32 %v44, 4294901760
  %v307 = vsub.f32 %v44, %v306
  %v308 = vand.u32 %v307, 4294901760
  %309 = vmatmul.f32.gmra.mxu0 %v308
  %v310 = vpop.f32.mrf.mxu0
  %v311 = vadd.f32 %v245, %v310
  %v312 = vand.u32 %v47, 4294901760
  %v313 = vsub.f32 %v47, %v312
  %v314 = vand.u32 %v313, 4294901760
  %315 = vmatmul.f32.gmra.mxu0 %v314
  %v316 = vpop.f32.mrf.mxu0
  %v317 = vadd.f32 %v250, %v316
  %318 = vdwg.mxu0
  %319 = vmatpush.msra.mxu0 0.0
  %320 = vmatpush.msra.mxu0 0.0
  %321 = vmatpush.msra.mxu0 0.0
  %322 = vmatpush.msra.mxu0 0.0
  %323 = vmatpush.msra.mxu0 0.0
  %324 = vmatpush.msra.mxu0 0.0
  %325 = vmatpush.msra.mxu0 0.0
  %326 = vmatpush.msra.mxu0 0.0
  %327 = vmatpush.msra.mxu0 0.0
  %328 = vmatpush.msra.mxu0 0.0
  %329 = vmatpush.msra.mxu0 0.0
  %330 = vmatpush.msra.mxu0 0.0
  %331 = vmatpush.msra.mxu0 0.0
  %332 = vmatpush.msra.mxu0 0.0
  %v333 = vand.u32 %v15, 4294901760
  %v334 = vsub.f32 %v15, %v333
  %v335 = vand.u32 %v334, 4294901760
  %336 = vmatpush.msra.mxu0 %v335
  %v337 = vand.u32 %v14, 4294901760
  %v338 = vsub.f32 %v14, %v337
  %v339 = vand.u32 %v338, 4294901760
  %340 = vmatpush.msra.mxu0 %v339
  %v341 = vand.u32 %v26, 4294901760
  %342 = vmatmul.f32.gmra.mxu0 %v341
  %v343 = vpop.f32.mrf.mxu0
  %v344 = vadd.f32 %v275, %v343
  %v345 = vand.u32 %v29, 4294901760
  %346 = vmatmul.f32.gmra.mxu0 %v345
  %v347 = vpop.f32.mrf.mxu0
  %v348 = vadd.f32 %v281, %v347
  %v349 = vand.u32 %v32, 4294901760
  %350 = vmatmul.f32.gmra.mxu0 %v349
  %v351 = vpop.f32.mrf.mxu0
  %v352 = vadd.f32 %v287, %v351
  %v353 = vand.u32 %v35, 4294901760
  %354 = vmatmul.f32.gmra.mxu0 %v353
  %v355 = vpop.f32.mrf.mxu0
  %v356 = vadd.f32 %v293, %v355
  %v357 = vand.u32 %v38, 4294901760
  %358 = vmatmul.f32.gmra.mxu0 %v357
  %v359 = vpop.f32.mrf.mxu0
  %v360 = vadd.f32 %v299, %v359
  %v361 = vand.u32 %v41, 4294901760
  %362 = vmatmul.f32.gmra.mxu0 %v361
  %v363 = vpop.f32.mrf.mxu0
  %v364 = vadd.f32 %v305, %v363
  %v365 = vand.u32 %v44, 4294901760
  %366 = vmatmul.f32.gmra.mxu0 %v365
  %v367 = vpop.f32.mrf.mxu0
  %v368 = vadd.f32 %v311, %v367
  %v369 = vand.u32 %v47, 4294901760
  %370 = vmatmul.f32.gmra.mxu0 %v369
  %v371 = vpop.f32.mrf.mxu0
  %v372 = vadd.f32 %v317, %v371
  %373 = vdwg.mxu0
  %374 = vmatpush.msra.mxu0 0.0
  %375 = vmatpush.msra.mxu0 0.0
  %376 = vmatpush.msra.mxu0 0.0
  %377 = vmatpush.msra.mxu0 0.0
  %378 = vmatpush.msra.mxu0 0.0
  %379 = vmatpush.msra.mxu0 0.0
  %380 = vmatpush.msra.mxu0 0.0
  %381 = vmatpush.msra.mxu0 0.0
  %382 = vmatpush.msra.mxu0 0.0
  %383 = vmatpush.msra.mxu0 0.0
  %384 = vmatpush.msra.mxu0 0.0
  %385 = vmatpush.msra.mxu0 0.0
  %386 = vmatpush.msra.mxu0 0.0
  %387 = vmatpush.msra.mxu0 0.0
  %v388 = vand.u32 %v15, 4294901760
  %389 = vmatpush.msra.mxu0 %v388
  %v390 = vand.u32 %v14, 4294901760
  %391 = vmatpush.msra.mxu0 %v390
  %v392 = vand.u32 %v26, 4294901760
  %393 = vmatmul.f32.gmra.mxu0 %v392
  %v394 = vpop.f32.mrf.mxu0
  %v395 = vadd.f32 %v344, %v394
  %v396 = vand.u32 %v29, 4294901760
  %397 = vmatmul.f32.gmra.mxu0 %v396
  %v398 = vpop.f32.mrf.mxu0
  %v399 = vadd.f32 %v348, %v398
  %v400 = vand.u32 %v32, 4294901760
  %401 = vmatmul.f32.gmra.mxu0 %v400
  %v402 = vpop.f32.mrf.mxu0
  %v403 = vadd.f32 %v352, %v402
  %v404 = vand.u32 %v35, 4294901760
  %405 = vmatmul.f32.gmra.mxu0 %v404
  %v406 = vpop.f32.mrf.mxu0
  %v407 = vadd.f32 %v356, %v406
  %v408 = vand.u32 %v38, 4294901760
  %409 = vmatmul.f32.gmra.mxu0 %v408
  %v410 = vpop.f32.mrf.mxu0
  %v411 = vadd.f32 %v360, %v410
  %v412 = vand.u32 %v41, 4294901760
  %413 = vmatmul.f32.gmra.mxu0 %v412
  %v414 = vpop.f32.mrf.mxu0
  %v415 = vadd.f32 %v364, %v414
  %v416 = vand.u32 %v44, 4294901760
  %417 = vmatmul.f32.gmra.mxu0 %v416
  %v418 = vpop.f32.mrf.mxu0
  %v419 = vadd.f32 %v368, %v418
  %v420 = vand.u32 %v47, 4294901760
  %421 = vmatmul.f32.gmra.mxu0 %v420
  %v422 = vpop.f32.mrf.mxu0
  %v423 = vadd.f32 %v372, %v422
  %424 = vdwg.mxu0
  %v425 = vld [vmem:[%s2] sm:$0xff]
  %427 = vset.pattern.permute.xlu0 0
  %428 = vperm.xlu0 %427, %v425
  %v429 = vpop.permute.xlu0 %428
  %431 = vset.pattern.permute.xlu0 1
  %432 = vperm.xlu0 %431, %v425
  %v433 = vpop.permute.xlu0 %432
  %435 = vset.pattern.permute.xlu0 2
  %436 = vperm.xlu0 %435, %v425
  %v437 = vpop.permute.xlu0 %436
  %v439 = vadd.f32 %v395, %v429
  %v440 = vrot.slane %v439, 4
  %v441 = vadd.f32 %v439, %v440
  %v442 = vrot.slane %v441, 2
  %v443 = vadd.f32 %v441, %v442
  %v444 = vrot.slane %v443, 1
  %v445 = vadd.f32 %v443, %v444
  %v446 = vmul.f32 %v445, 0.125
  %v447 = vsub.f32 %v439, %v446
  %v448 = vmul.f32 %v447, %v447
  %v449 = vrot.slane %v448, 4
  %v450 = vadd.f32 %v448, %v449
  %v451 = vrot.slane %v450, 2
  %v452 = vadd.f32 %v450, %v451
  %v453 = vrot.slane %v452, 1
  %v454 = vadd.f32 %v452, %v453
  %v455 = vmul.f32 %v454, 0.125
  %v456 = vadd.f32 %v455, 1e-05
  %v457 = vrsqrt.pop %v456
  %v458 = vmul.f32 %v457, %v456
  %v459 = vmul.f32 %v458, %v457
  %v460 = vmul.f32 0.5, %v459
  %v461 = vsub.f32 1.5, %v460
  %v462 = vmul.f32 %v457, %v461
  %vm463 = vweird.f32 %v456
  %vm464 = vweird.f32 %v457
  %vm465 = vmor %vm463, %vm464
  %v466 = vsel %vm465, %v457, %v462
  %v467 = vmul.f32 %v447, %v466
  %v468 = vmul.f32 %v467, %v433
  %v469 = vadd.f32 %v468, %v437
  %470 = vst [vmem:[%s3] sm:$0xff] %v469
  %v471 = vadd.f32 %v399, %v429
  %v472 = vrot.slane %v471, 4
  %v473 = vadd.f32 %v471, %v472
  %v474 = vrot.slane %v473, 2
  %v475 = vadd.f32 %v473, %v474
  %v476 = vrot.slane %v475, 1
  %v477 = vadd.f32 %v475, %v476
  %v478 = vmul.f32 %v477, 0.125
  %v479 = vsub.f32 %v471, %v478
  %v480 = vmul.f32 %v479, %v479
  %v481 = vrot.slane %v480, 4
  %v482 = vadd.f32 %v480, %v481
  %v483 = vrot.slane %v482, 2
  %v484 = vadd.f32 %v482, %v483
  %v485 = vrot.slane %v484, 1
  %v486 = vadd.f32 %v484, %v485
  %v487 = vmul.f32 %v486, 0.125
  %v488 = vadd.f32 %v487, 1e-05
  %v489 = vrsqrt.pop %v488
  %v490 = vmul.f32 %v489, %v488
  %v491 = vmul.f32 %v490, %v489
  %v492 = vmul.f32 0.5, %v491
  %v493 = vsub.f32 1.5, %v492
  %v494 = vmul.f32 %v489, %v493
  %vm495 = vweird.f32 %v488
  %vm496 = vweird.f32 %v489
  %vm497 = vmor %vm495, %vm496
  %v498 = vsel %vm497, %v489, %v494
  %v499 = vmul.f32 %v479, %v498
  %v500 = vmul.f32 %v499, %v433
  %v501 = vadd.f32 %v500, %v437
  %502 = vst [vmem:[%s3 + $0x8] sm:$0xff] %v501
  %v503 = vadd.f32 %v403, %v429
  %v504 = vrot.slane %v503, 4
  %v505 = vadd.f32 %v503, %v504
  %v506 = vrot.slane %v505, 2
  %v507 = vadd.f32 %v505, %v506
  %v508 = vrot.slane %v507, 1
  %v509 = vadd.f32 %v507, %v508
  %v510 = vmul.f32 %v509, 0.125
  %v511 = vsub.f32 %v503, %v510
  %v512 = vmul.f32 %v511, %v511
  %v513 = vrot.slane %v512, 4
  %v514 = vadd.f32 %v512, %v513
  %v515 = vrot.slane %v514, 2
  %v516 = vadd.f32 %v514, %v515
  %v517 = vrot.slane %v516, 1
  %v518 = vadd.f32 %v516, %v517
  %v519 = vmul.f32 %v518, 0.125
  %v520 = vadd.f32 %v519, 1e-05
  %v521 = vrsqrt.pop %v520
  %v522 = vmul.f32 %v521, %v520
  %v523 = vmul.f32 %v522, %v521
  %v524 = vmul.f32 0.5, %v523
  %v525 = vsub.f32 1.5, %v524
  %v526 = vmul.f32 %v521, %v525
  %vm527 = vweird.f32 %v520
  %vm528 = vweird.f32 %v521
  %vm529 = vmor %vm527, %vm528
  %v530 = vsel %vm529, %v521, %v526
  %v531 = vmul.f32 %v511, %v530
  %v532 = vmul.f32 %v531, %v433
  %v533 = vadd.f32 %v532, %v437
  %534 = vst [vmem:[%s3 + $0x10] sm:$0xff] %v533
  %v535 = vadd.f32 %v407, %v429
  %v536 = vrot.slane %v535, 4
  %v537 = vadd.f32 %v535, %v536
  %v538 = vrot.slane %v537, 2
  %v539 = vadd.f32 %v537, %v538
  %v540 = vrot.slane %v539, 1
  %v541 = vadd.f32 %v539, %v540
  %v542 = vmul.f32 %v541, 0.125
  %v543 = vsub.f32 %v535, %v542
  %v544 = vmul.f32 %v543, %v543
  %v545 = vrot.slane %v544, 4
  %v546 = vadd.f32 %v544, %v545
  %v547 = vrot.slane %v546, 2
  %v548 = vadd.f32 %v546, %v547
  %v549 = vrot.slane %v548, 1
  %v550 = vadd.f32 %v548, %v549
  %v551 = vmul.f32 %v550, 0.125
  %v552 = vadd.f32 %v551, 1e-05
  %v553 = vrsqrt.pop %v552
  %v554 = vmul.f32 %v553, %v552
  %v555 = vmul.f32 %v554, %v553
  %v556 = vmul.f32 0.5, %v555
  %v557 = vsub.f32 1.5, %v556
  %v558 = vmul.f32 %v553, %v557
  %vm559 = vweird.f32 %v552
  %vm560 = vweird.f32 %v553
  %vm561 = vmor %vm559, %vm560
  %v562 = vsel %vm561, %v553, %v558
  %v563 = vmul.f32 %v543, %v562
  %v564 = vmul.f32 %v563, %v433
  %v565 = vadd.f32 %v564, %v437
  %566 = vst [vmem:[%s3 + $0x18] sm:$0xff] %v565
  %v567 = vadd.f32 %v411, %v429
  %v568 = vrot.slane %v567, 4
  %v569 = vadd.f32 %v567, %v568
  %v570 = vrot.slane %v569, 2
  %v571 = vadd.f32 %v569, %v570
  %v572 = vrot.slane %v571, 1
  %v573 = vadd.f32 %v571, %v572
  %v574 = vmul.f32 %v573, 0.125
  %v575 = vsub.f32 %v567, %v574
  %v576 = vmul.f32 %v575, %v575
  %v577 = vrot.slane %v576, 4
  %v578 = vadd.f32 %v576, %v577
  %v579 = vrot.slane %v578, 2
  %v580 = vadd.f32 %v578, %v579
  %v581 = vrot.slane %v580, 1
  %v582 = vadd.f32 %v580, %v581
  %v583 = vmul.f32 %v582, 0.125
  %v584 = vadd.f32 %v583, 1e-05
  %v585 = vrsqrt.pop %v584
  %v586 = vmul.f32 %v585, %v584
  %v587 = vmul.f32 %v586, %v585
  %v588 = vmul.f32 0.5, %v587
  %v589 = vsub.f32 1.5, %v588
  %v590 = vmul.f32 %v585, %v589
  %vm591 = vweird.f32 %v584
  %vm592 = vweird.f32 %v585
  %vm593 = vmor %vm591, %vm592
  %v594 = vsel %vm593, %v585, %v590
  %v595 = vmul.f32 %v575, %v594
  %v596 = vmul.f32 %v595, %v433
  %v597 = vadd.f32 %v596, %v437
  %598 = vst [vmem:[%s3 + $0x20] sm:$0xff] %v597
  %v599 = vadd.f32 %v415, %v429
  %v600 = vrot.slane %v599, 4
  %v601 = vadd.f32 %v599, %v600
  %v602 = vrot.slane %v601, 2
  %v603 = vadd.f32 %v601, %v602
  %v604 = vrot.slane %v603, 1
  %v605 = vadd.f32 %v603, %v604
  %v606 = vmul.f32 %v605, 0.125
  %v607 = vsub.f32 %v599, %v606
  %v608 = vmul.f32 %v607, %v607
  %v609 = vrot.slane %v608, 4
  %v610 = vadd.f32 %v608, %v609
  %v611 = vrot.slane %v610, 2
  %v612 = vadd.f32 %v610, %v611
  %v613 = vrot.slane %v612, 1
  %v614 = vadd.f32 %v612, %v613
  %v615 = vmul.f32 %v614, 0.125
  %v616 = vadd.f32 %v615, 1e-05
  %v617 = vrsqrt.pop %v616
  %v618 = vmul.f32 %v617, %v616
  %v619 = vmul.f32 %v618, %v617
  %v620 = vmul.f32 0.5, %v619
  %v621 = vsub.f32 1.5, %v620
  %v622 = vmul.f32 %v617, %v621
  %vm623 = vweird.f32 %v616
  %vm624 = vweird.f32 %v617
  %vm625 = vmor %vm623, %vm624
  %v626 = vsel %vm625, %v617, %v622
  %v627 = vmul.f32 %v607, %v626
  %v628 = vmul.f32 %v627, %v433
  %v629 = vadd.f32 %v628, %v437
  %630 = vst [vmem:[%s3 + $0x28] sm:$0xff] %v629
  %v631 = vadd.f32 %v419, %v429
  %v632 = vrot.slane %v631, 4
  %v633 = vadd.f32 %v631, %v632
  %v634 = vrot.slane %v633, 2
  %v635 = vadd.f32 %v633, %v634
  %v636 = vrot.slane %v635, 1
  %v637 = vadd.f32 %v635, %v636
  %v638 = vmul.f32 %v637, 0.125
  %v639 = vsub.f32 %v631, %v638
  %v640 = vmul.f32 %v639, %v639
  %v641 = vrot.slane %v640, 4
  %v642 = vadd.f32 %v640, %v641
  %v643 = vrot.slane %v642, 2
  %v644 = vadd.f32 %v642, %v643
  %v645 = vrot.slane %v644, 1
  %v646 = vadd.f32 %v644, %v645
  %v647 = vmul.f32 %v646, 0.125
  %v648 = vadd.f32 %v647, 1e-05
  %v649 = vrsqrt.pop %v648
  %v650 = vmul.f32 %v649, %v648
  %v651 = vmul.f32 %v650, %v649
  %v652 = vmul.f32 0.5, %v651
  %v653 = vsub.f32 1.5, %v652
  %v654 = vmul.f32 %v649, %v653
  %vm655 = vweird.f32 %v648
  %vm656 = vweird.f32 %v649
  %vm657 = vmor %vm655, %vm656
  %v658 = vsel %vm657, %v649, %v654
  %v659 = vmul.f32 %v639, %v658
  %v660 = vmul.f32 %v659, %v433
  %v661 = vadd.f32 %v660, %v437
  %662 = vst [vmem:[%s3 + $0x30] sm:$0xff] %v661
  %v663 = vadd.f32 %v423, %v429
  %v664 = vrot.slane %v663, 4
  %v665 = vadd.f32 %v663, %v664
  %v666 = vrot.slane %v665, 2
  %v667 = vadd.f32 %v665, %v666
  %v668 = vrot.slane %v667, 1
  %v669 = vadd.f32 %v667, %v668
  %v670 = vmul.f32 %v669, 0.125
  %v671 = vsub.f32 %v663, %v670
  %v672 = vmul.f32 %v671, %v671
  %v673 = vrot.slane %v672, 4
  %v674 = vadd.f32 %v672, %v673
  %v675 = vrot.slane %v674, 2
  %v676 = vadd.f32 %v674, %v675
  %v677 = vrot.slane %v676, 1
  %v678 = vadd.f32 %v676, %v677
  %v679 = vmul.f32 %v678, 0.125
  %v680 = vadd.f32 %v679, 1e-05
  %v681 = vrsqrt.pop %v680
  %v682 = vmul.f32 %v681, %v680
  %v683 = vmul.f32 %v682, %v681
  %v684 = vmul.f32 0.5, %v683
  %v685 = vsub.f32 1.5, %v684
  %v686 = vmul.f32 %v681, %v685
  %vm687 = vweird.f32 %v680
  %vm688 = vweird.f32 %v681
  %vm689 = vmor %vm687, %vm688
  %v690 = vsel %vm689, %v681, %v686
  %v691 = vmul.f32 %v671, %v690
  %v692 = vmul.f32 %v691, %v433
  %v693 = vadd.f32 %v692, %v437
  %694 = vst [vmem:[%s3 + $0x38] sm:$0xff] %v693
  // Predicated region
  $region14: #{patch_expanding_3d.1} parent=0 // pred_check
    _
  $region15: #{patch_expanding_3d.1} parent=0 // pred_check_branch
    %696 = sbr.rel (0) target = $region17
  $region16: #{patch_expanding_3d.1} parent=0 // pred_region
    _
  $region17: #{patch_expanding_3d.1} parent=0 // pred_fallthru
    _
  // Predicated region
  $region18: #{patch_expanding_3d.1} parent=0 // pred_check
    _
  $region19: #{patch_expanding_3d.1} parent=0 // pred_check_branch
    %698 = sbr.rel (0) target = $region21
  $region20: #{patch_expanding_3d.1} parent=0 // pred_region
    _
  $region21: #{patch_expanding_3d.1} parent=0 // pred_fallthru
    _

</llo_original>
